<compile_context>
chip_gen: v7x
topology: tpu7x:2x2x1
jax: 0.10.0
libtpu: 0.0.40
codegen_flags: <defaults>
</compile_context>

<pallas_src>
import functools

import jax
import jax.numpy as jnp
from jax.experimental import pallas as pl
from jax.experimental.pallas import tpu as pltpu

_LANE = 128   # vreg lane width
_SUBLANE = 8  # f32 sublane count


def _cdiv(a, b):
    return -(-a // b)


def _round_up(x, m):
    return _cdiv(x, m) * m


def _pad2d(a, rows, cols):
    pr, pc = rows - a.shape[0], cols - a.shape[1]
    if pr or pc:
        a = jnp.pad(a, ((0, pr), (0, pc)))
    return a


def _qnet_kernel(x_ref, w1_ref, b1_ref, w2_ref, b2_ref, w3_ref, b3_ref, o_ref):
    # Layer 1: contraction over K = state_size (tiny, unpadded) -> keep f32 operands.
    x = x_ref[...]                                                     # (TB, S) f32
    h = jnp.dot(x, w1_ref[...], preferred_element_type=jnp.float32) + b1_ref[...]
    h = jnp.maximum(h, 0.0)                                            # ReLU, f32 VPU
    # Layer 2: lane-dense H_p x H_p matmul, bf16 operands / f32 accumulation.
    h = jnp.dot(h.astype(w2_ref.dtype), w2_ref[...],
                preferred_element_type=jnp.float32) + b2_ref[...]
    h = jnp.maximum(h, 0.0)
    # Layer 3: slim output (N = action_size), bf16 operands / f32 accumulation.
    q = jnp.dot(h.astype(w3_ref.dtype), w3_ref[...],
                preferred_element_type=jnp.float32) + b3_ref[...]
    o_ref[...] = q.astype(o_ref.dtype)                                 # (TB, A) store


def _choose_batch_tiling(B, batch_tile):
    """Pick (TB, num_steps, padded_B). TB is a multiple of 8 and fitted to B so the
    last tile is not mostly padding; large batches always get >= 4 grid steps so
    v7x's two TensorCores can both be used."""
    B8 = _round_up(B, _SUBLANE)
    batch_tile = max(_SUBLANE, _round_up(batch_tile, _SUBLANE))
    if B8 <= 4 * _SUBLANE:
        return B8, 1, B8                      # single whole-batch block (grid=() path)
    num_steps = max(4, _cdiv(B8, batch_tile))
    tb = min(batch_tile, _round_up(_cdiv(B8, num_steps), _SUBLANE))
    num_steps = _cdiv(B8, tb)
    return tb, num_steps, tb * num_steps


@functools.partial(jax.jit, static_argnames=("batch_tile",))
def qnetwork_forward(state, prepared_params, *, batch_tile=512):
    """state: (B, state_size) f32. prepared_params: output of prepare_params.
    Returns Q-values (B, action_size) f32."""
    w1, b1, w2, b2, w3, b3 = prepared_params
    B, S = state.shape
    H_p = w1.shape[1]
    A = w3.shape[1]

    TB, num_steps, B_p = _choose_batch_tiling(B, batch_tile)
    x = state if B_p == B else jnp.pad(state, ((0, B_p - B), (0, 0)))

    if num_steps == 1:
        # Tiny-batch fast path: whole arrays as single VMEM blocks, no pipeline.
        q = pl.pallas_call(
            _qnet_kernel,
            out_shape=jax.ShapeDtypeStruct((B_p, A), jnp.float32),
        )(x, w1, b1, w2, b2, w3, b3)
    else:
        row = lambda shape: pl.BlockSpec(shape, lambda i: (i, 0))   # batch-tiled
        res = lambda shape: pl.BlockSpec(shape, lambda i: (0, 0))   # VMEM-resident

        # Raise the scoped VMEM limit only when resident weights get large
        # (e.g. hidden_size in the thousands); leave the default otherwise.
        weight_bytes = sum(int(a.size) * a.dtype.itemsize
                           for a in (w1, b1, w2, b2, w3, b3))
        need = 2 * weight_bytes + 4 * TB * (S + A) * 4 + 3 * TB * H_p * 4 + (2 << 20)
        vmem_limit = None if need <= (32 << 20) else int(min(need, 96 << 20))

        q = pl.pallas_call(
            _qnet_kernel,
            out_shape=jax.ShapeDtypeStruct((B_p, A), jnp.float32),
            grid=(num_steps,),
            in_specs=[
                row((TB, S)),
                res(w1.shape), res(b1.shape),
                res(w2.shape), res(b2.shape),
                res(w3.shape), res(b3.shape),
            ],
            out_specs=row((TB, A)),
            compiler_params=pltpu.CompilerParams(
                dimension_semantics=("parallel",),   # shard batch tiles over v7x's 2 TCs
                vmem_limit_bytes=vmem_limit,
            ),
        )(x, w1, b1, w2, b2, w3, b3)

    return q if B_p == B else q[:B]


def prepare_params(params, *, hidden_dtype=jnp.bfloat16):
    """Pad the hidden dim to a lane-dense multiple of 128 and cast the hidden-layer
    weights to the MXU dtype ONCE. Call at init / after each parameter update, not
    per forward. Zero padding is mathematically inert: padded hidden lanes are
    relu(0 + 0) = 0 and feed zero weight rows."""
    w1, b1, w2, b2, w3, b3 = params
    S, H = w1.shape
    A = w3.shape[1]
    H_p = _round_up(H, _LANE)

    w1_p = _pad2d(jnp.asarray(w1, jnp.float32), S, H_p)                      # (S, H_p) f32
    b1_p = _pad2d(jnp.asarray(b1, jnp.float32).reshape(1, -1), 1, H_p)       # (1, H_p) f32
    w2_p = _pad2d(jnp.asarray(w2, jnp.float32), H_p, H_p).astype(hidden_dtype)
    b2_p = _pad2d(jnp.asarray(b2, jnp.float32).reshape(1, -1), 1, H_p)
    w3_p = _pad2d(jnp.asarray(w3, jnp.float32), H_p, A).astype(hidden_dtype)  # (H_p, A)
    b3_p = jnp.asarray(b3, jnp.float32).reshape(1, -1)                        # (1, A)
    return (w1_p, b1_p, w2_p, b2_p, w3_p, b3_p)


def init_params(key, state_size, action_size, hidden_size):
    """Deterministic init mimicking nn.Linear's uniform(-1/sqrt(fan_in), ...)."""
    ks = jax.random.split(key, 6)

    def linear(kw, kb, fan_in, fan_out):
        bound = 1.0 / jnp.sqrt(jnp.float32(fan_in))
        w = jax.random.uniform(kw, (fan_in, fan_out), jnp.float32, -bound, bound)
        b = jax.random.uniform(kb, (1, fan_out), jnp.float32, -bound, bound)
        return w, b

    w1, b1 = linear(ks[0], ks[1], state_size, hidden_size)
    w2, b2 = linear(ks[2], ks[3], hidden_size, hidden_size)
    w3, b3 = linear(ks[4], ks[5], hidden_size, action_size)
    return (w1, b1, w2, b2, w3, b3)


def _reference_forward(x, raw_params):
    w1, b1, w2, b2, w3, b3 = raw_params
    h1 = jnp.maximum(x @ w1 + b1, 0.0)
    h2 = jnp.maximum(h1 @ w2 + b2, 0.0)
    return h2 @ w3 + b3


if __name__ == "__main__":
    # CartPole-v1-like sizes: state_size=4, action_size=2, hidden_size=32.
    B, S, H, A = 2, 4, 32, 2
    key = jax.random.PRNGKey(0)
    k_params, k_state, k_big = jax.random.split(key, 3)

    raw_params = init_params(k_params, S, A, H)
    params = prepare_params(raw_params)          # pad + cast once, outside the forward

    # Tiny batch (grid=() fast path).
    state = jax.random.normal(k_state, (B, S), jnp.float32)
    q = jax.block_until_ready(qnetwork_forward(state, params))
    assert q.shape == (B, A)
    q_ref = _reference_forward(state, raw_params)
    assert jnp.allclose(q, q_ref, atol=5e-2, rtol=5e-2), (q, q_ref)

    # Replay-sized batch (tiled grid path, >= 4 "parallel" steps, tail-fitted tile).
    B_big = 300
    state_big = jax.random.normal(k_big, (B_big, S), jnp.float32)
    q_big = jax.block_until_ready(qnetwork_forward(state_big, params))
    assert q_big.shape == (B_big, A)
    q_big_ref = _reference_forward(state_big, raw_params)
    assert jnp.allclose(q_big, q_big_ref, atol=5e-2, rtol=5e-2)

    print("KERNEL_OK")
</pallas_src>

<mosaic_0001>
module attributes {stable_mosaic.version = 11 : i64} {
  func.func @_qnet_kernel(%arg0: memref<8x4xf32, #tpu.memory_space<vmem>>, %arg1: memref<4x128xf32, #tpu.memory_space<vmem>>, %arg2: memref<1x128xf32, #tpu.memory_space<vmem>>, %arg3: memref<128x128xbf16, #tpu.memory_space<vmem>>, %arg4: memref<1x128xf32, #tpu.memory_space<vmem>>, %arg5: memref<128x2xbf16, #tpu.memory_space<vmem>>, %arg6: memref<1x2xf32, #tpu.memory_space<vmem>>, %arg7: memref<8x2xf32, #tpu.memory_space<vmem>>) attributes {dimension_semantics = [], scalar_prefetch = 0 : i64, scratch_operands = 0 : i64, tpu.core_type = #tpu.core_type<tc>} {
    %c0 = arith.constant 0 : index
    %c0_0 = arith.constant 0 : index
    %0 = vector.load %arg0[%c0, %c0_0] : memref<8x4xf32, #tpu.memory_space<vmem>>, vector<8x4xf32>
    %c0_1 = arith.constant 0 : index
    %c0_2 = arith.constant 0 : index
    %1 = vector.load %arg1[%c0_1, %c0_2] : memref<4x128xf32, #tpu.memory_space<vmem>>, vector<4x128xf32>
    %cst = arith.constant dense<0.000000e+00> : vector<8x128xf32>
    %2 = tpu.matmul %0, %1, %cst {dimension_numbers = #tpu.dot_dimension_numbers<[1], [0], [0], [1], [0, 0, 1, 1], [], []>} : vector<8x4xf32>, vector<4x128xf32>, vector<8x128xf32> -> vector<8x128xf32>
    %c0_3 = arith.constant 0 : index
    %c0_4 = arith.constant 0 : index
    %3 = vector.load %arg2[%c0_3, %c0_4] : memref<1x128xf32, #tpu.memory_space<vmem>>, vector<1x128xf32>
    %4 = vector.broadcast %3 : vector<1x128xf32> to vector<8x128xf32>
    %5 = arith.addf %2, %4 : vector<8x128xf32>
    %cst_5 = arith.constant 0.000000e+00 : f32
    %6 = vector.broadcast %cst_5 : f32 to vector<8x128xf32>
    %7 = arith.maximumf %5, %6 : vector<8x128xf32>
    %8 = arith.truncf %7 : vector<8x128xf32> to vector<8x128xbf16>
    %c0_6 = arith.constant 0 : index
    %c0_7 = arith.constant 0 : index
    %9 = vector.load %arg3[%c0_6, %c0_7] : memref<128x128xbf16, #tpu.memory_space<vmem>>, vector<128x128xbf16>
    %cst_8 = arith.constant dense<0.000000e+00> : vector<8x128xf32>
    %10 = tpu.matmul %8, %9, %cst_8 {dimension_numbers = #tpu.dot_dimension_numbers<[1], [0], [0], [1], [0, 0, 1, 1], [], []>} : vector<8x128xbf16>, vector<128x128xbf16>, vector<8x128xf32> -> vector<8x128xf32>
    %c0_9 = arith.constant 0 : index
    %c0_10 = arith.constant 0 : index
    %11 = vector.load %arg4[%c0_9, %c0_10] : memref<1x128xf32, #tpu.memory_space<vmem>>, vector<1x128xf32>
    %12 = vector.broadcast %11 : vector<1x128xf32> to vector<8x128xf32>
    %13 = arith.addf %10, %12 : vector<8x128xf32>
    %cst_11 = arith.constant 0.000000e+00 : f32
    %14 = vector.broadcast %cst_11 : f32 to vector<8x128xf32>
    %15 = arith.maximumf %13, %14 : vector<8x128xf32>
    %16 = arith.truncf %15 : vector<8x128xf32> to vector<8x128xbf16>
    %c0_12 = arith.constant 0 : index
    %c0_13 = arith.constant 0 : index
    %17 = vector.load %arg5[%c0_12, %c0_13] : memref<128x2xbf16, #tpu.memory_space<vmem>>, vector<128x2xbf16>
    %cst_14 = arith.constant dense<0.000000e+00> : vector<8x2xf32>
    %18 = tpu.matmul %16, %17, %cst_14 {dimension_numbers = #tpu.dot_dimension_numbers<[1], [0], [0], [1], [0, 0, 1, 1], [], []>} : vector<8x128xbf16>, vector<128x2xbf16>, vector<8x2xf32> -> vector<8x2xf32>
    %c0_15 = arith.constant 0 : index
    %c0_16 = arith.constant 0 : index
    %19 = vector.load %arg6[%c0_15, %c0_16] : memref<1x2xf32, #tpu.memory_space<vmem>>, vector<1x2xf32>
    %20 = vector.broadcast %19 : vector<1x2xf32> to vector<8x2xf32>
    %21 = arith.addf %18, %20 : vector<8x2xf32>
    %c0_17 = arith.constant 0 : index
    %c0_18 = arith.constant 0 : index
    %22 = vector.load %arg7[%c0_17, %c0_18] : memref<8x2xf32, #tpu.memory_space<vmem>>, vector<8x2xf32>
    tpu.vector_store %arg7[%c0_17, %c0_18], %21 {strides = array<i32>} : memref<8x2xf32, #tpu.memory_space<vmem>>, vector<8x2xf32>,
    return
  }
}

</mosaic_0001>

<llo_original>
// kernel: qnetwork_forward.1
$region0: #{qnetwork_forward.1}
  #allocation0 [shape = 'u32[]', space=smem, size = 0x4, offset = 0x4, fixed_abs, tag = 'smem constant byte address 0x4 - core index']
  #allocation1 [shape = 'u32[144,128]{1,0:T(1,128)}', space=vmem, size = 0x12000, scoped, tag = 'internal scratch']
  %s0 = inlined_call_operand.vmem [shape: f32[8,4], index: 0, kind: input, shape index: {}]
  %s1 = inlined_call_operand.vmem [shape: f32[4,128], index: 1, kind: input, shape index: {}]
  %s2 = inlined_call_operand.vmem [shape: f32[1,128], index: 2, kind: input, shape index: {}]
  %s3 = inlined_call_operand.vmem [shape: bf16[128,128], index: 3, kind: input, shape index: {}]
  %s4 = inlined_call_operand.vmem [shape: f32[1,128], index: 4, kind: input, shape index: {}]
  %s5 = inlined_call_operand.vmem [shape: bf16[128,2], index: 5, kind: input, shape index: {}]
  %s6 = inlined_call_operand.vmem [shape: f32[1,2], index: 6, kind: input, shape index: {}]
  %s7 = inlined_call_operand.vmem [shape: f32[8,2], index: 7, kind: output, shape index: {}]
  %s8 = sld [smem:[#allocation0]]
  $region38: #{qnetwork_forward.1} parent=0
    _
  %s10 = ssub.s32 1, %s8
  %s11 = scalar_select 0, %s10, %s8
  // Predicated region
  $region2: #{qnetwork_forward.1} parent=0 // pred_check
    _
  $region3: #{qnetwork_forward.1} parent=0 // pred_check_branch
    %13 = sbr.rel (0) target = $region5
  $region4: #{qnetwork_forward.1} parent=0 // pred_region
    _
  $region5: #{qnetwork_forward.1} parent=0 // pred_fallthru
    _
  // Predicated region
  $region6: #{qnetwork_forward.1} parent=0 // pred_check
    _
  $region7: #{qnetwork_forward.1} parent=0 // pred_check_branch
    %15 = sbr.rel (0) target = $region9
  $region8: #{qnetwork_forward.1} parent=0 // pred_region
    _
  $region9: #{qnetwork_forward.1} parent=0 // pred_fallthru
    _
  // Predicated region
  $region10: #{qnetwork_forward.1} parent=0 // pred_check
    _
  $region11: #{qnetwork_forward.1} parent=0 // pred_check_branch
    %17 = sbr.rel (0) target = $region13
  $region12: #{qnetwork_forward.1} parent=0 // pred_region
    _
  $region13: #{qnetwork_forward.1} parent=0 // pred_fallthru
    _
  // Predicated region
  $region14: #{qnetwork_forward.1} parent=0 // pred_check
    _
  $region15: #{qnetwork_forward.1} parent=0 // pred_check_branch
    %19 = sbr.rel (0) target = $region17
  $region16: #{qnetwork_forward.1} parent=0 // pred_region
    _
  $region17: #{qnetwork_forward.1} parent=0 // pred_fallthru
    _
  // Predicated region
  $region18: #{qnetwork_forward.1} parent=0 // pred_check
    _
  $region19: #{qnetwork_forward.1} parent=0 // pred_check_branch
    %21 = sbr.rel (0) target = $region21
  $region20: #{qnetwork_forward.1} parent=0 // pred_region
    _
  $region21: #{qnetwork_forward.1} parent=0 // pred_fallthru
    _
  // Predicated region
  $region22: #{qnetwork_forward.1} parent=0 // pred_check
    _
  $region23: #{qnetwork_forward.1} parent=0 // pred_check_branch
    %23 = sbr.rel (0) target = $region25
  $region24: #{qnetwork_forward.1} parent=0 // pred_region
    _
  $region25: #{qnetwork_forward.1} parent=0 // pred_fallthru
    _
  // Predicated region
  $region26: #{qnetwork_forward.1} parent=0 // pred_check
    _
  $region27: #{qnetwork_forward.1} parent=0 // pred_check_branch
    %25 = sbr.rel (0) target = $region29
  $region28: #{qnetwork_forward.1} parent=0 // pred_region
    _
  $region29: #{qnetwork_forward.1} parent=0 // pred_fallthru
    _
  %v27 = vld [vmem:[%s0] sm:$0xff]
  %v28 = vld [vmem:[%s1] sm:$0xf]
  %v29 = vld [vmem:[%s2] sm:$0x1]
  %v31 = vlaneseq
  %v32 = vshrl.u32 %v31, 7
  %v33 = vsub.s32 0, %v32
  %v34 = vrot.slane %v29, %v33
  %vm36 = vcmask 31744
  %v38 = vsel %vm36, %v27, 0
  %vm40 = vcmask 1043456
  %v42 = vsel %vm40, %v28, 0
  %44 = vmatprep.subr.mxu0 0.0
  %45 = vmatpush1.msra.mxu0 %v42
  %46 = vmatprep.subr.mxu0 0.0
  %47 = vmatpush1.msra.mxu0 0.0
  %48 = vmatprep.subr.mxu0 0.0
  %49 = vmatpush1.msra.mxu0 0.0
  %50 = vmatprep.subr.mxu0 0.0
  %51 = vmatpush1.msra.mxu0 0.0
  %52 = vmatprep.subr.mxu0 0.0
  %53 = vmatpush1.msra.mxu0 0.0
  %54 = vmatprep.subr.mxu0 0.0
  %55 = vmatpush1.msra.mxu0 0.0
  %56 = vmatprep.subr.mxu0 0.0
  %57 = vmatpush1.msra.mxu0 0.0
  %58 = vmatprep.subr.mxu0 0.0
  %59 = vmatpush1.msra.mxu0 0.0
  %60 = vmatprep.subr.mxu0 0.0
  %61 = vmatpush1.msra.mxu0 0.0
  %62 = vmatprep.subr.mxu0 0.0
  %63 = vmatpush1.msra.mxu0 0.0
  %64 = vmatprep.subr.mxu0 0.0
  %65 = vmatpush1.msra.mxu0 0.0
  %66 = vmatprep.subr.mxu0 0.0
  %67 = vmatpush1.msra.mxu0 0.0
  %68 = vmatprep.subr.mxu0 0.0
  %69 = vmatpush1.msra.mxu0 0.0
  %70 = vmatprep.subr.mxu0 0.0
  %71 = vmatpush1.msra.mxu0 0.0
  %72 = vmatprep.subr.mxu0 0.0
  %73 = vmatpush1.msra.mxu0 0.0
  %74 = vmatprep.subr.mxu0 0.0
  %75 = vmatpush1.msra.mxu0 0.0
  %76 = vmatprep.subr.mxu0 0.0
  %77 = vmatpush1.msra.mxu0 0.0
  %78 = vmatprep.subr.mxu0 0.0
  %79 = vmatpush1.msra.mxu0 0.0
  %80 = vmatprep.subr.mxu0 0.0
  %81 = vmatpush1.msra.mxu0 0.0
  %82 = vmatprep.subr.mxu0 0.0
  %83 = vmatpush1.msra.mxu0 0.0
  %84 = vmatprep.subr.mxu0 0.0
  %85 = vmatpush1.msra.mxu0 0.0
  %86 = vmatprep.subr.mxu0 0.0
  %87 = vmatpush1.msra.mxu0 0.0
  %88 = vmatprep.subr.mxu0 0.0
  %89 = vmatpush1.msra.mxu0 0.0
  %90 = vmatprep.subr.mxu0 0.0
  %91 = vmatpush1.msra.mxu0 0.0
  %92 = vmatprep.subr.mxu0 0.0
  %93 = vmatpush1.msra.mxu0 0.0
  %94 = vmatprep.subr.mxu0 0.0
  %95 = vmatpush1.msra.mxu0 0.0
  %96 = vmatprep.subr.mxu0 0.0
  %97 = vmatpush1.msra.mxu0 0.0
  %98 = vmatprep.subr.mxu0 0.0
  %99 = vmatpush1.msra.mxu0 0.0
  %100 = vmatprep.subr.mxu0 0.0
  %101 = vmatpush1.msra.mxu0 0.0
  %102 = vmatprep.subr.mxu0 0.0
  %103 = vmatpush1.msra.mxu0 0.0
  %104 = vmatprep.subr.mxu0 0.0
  %105 = vmatpush1.msra.mxu0 0.0
  %106 = vmatprep.subr.mxu0 0.0
  %107 = vmatpush1.msra.mxu0 0.0
  %108 = vmatprep.mubr.f32.mxu0 0.0
  %109 = vmatmul.mubr.f32.gmra.mrb[0].mxu0 %v38
  %v110 = vpop.f32.mrb[0].mxu0
  %v111 = vadd.f32 %v34, %v110
  %v112 = vpop.f32.mrb[0].mxu0
  %113 = vdwg.mxu0
  %v114 = vmax.f32 %v111, 0.0
  %v115 = vpack.c.bf16 %v114, %v114
  %v116 = vld [vmem:[%s3] sm:$0xf]
  %v117 = vld [vmem:[%s3 + $0x4] sm:$0xf]
  %v118 = vld [vmem:[%s3 + $0x8] sm:$0xf]
  %v119 = vld [vmem:[%s3 + $0xc] sm:$0xf]
  %v120 = vld [vmem:[%s3 + $0x10] sm:$0xf]
  %v121 = vld [vmem:[%s3 + $0x14] sm:$0xf]
  %v122 = vld [vmem:[%s3 + $0x18] sm:$0xf]
  %v123 = vld [vmem:[%s3 + $0x1c] sm:$0xf]
  %v124 = vld [vmem:[%s3 + $0x20] sm:$0xf]
  %v125 = vld [vmem:[%s3 + $0x24] sm:$0xf]
  %v126 = vld [vmem:[%s3 + $0x28] sm:$0xf]
  %v127 = vld [vmem:[%s3 + $0x2c] sm:$0xf]
  %v128 = vld [vmem:[%s3 + $0x30] sm:$0xf]
  %v129 = vld [vmem:[%s3 + $0x34] sm:$0xf]
  %v130 = vld [vmem:[%s3 + $0x38] sm:$0xf]
  %v131 = vld [vmem:[%s3 + $0x3c] sm:$0xf]
  %v132 = vld [vmem:[%s4] sm:$0x1]
  %v134 = vlaneseq
  %v135 = vshrl.u32 %v134, 7
  %v136 = vsub.s32 0, %v135
  %v137 = vrot.slane %v132, %v136
  %v155 = vunpack.c.l.b16 %v116
  %v156 = vunpack.c.l.b16 %v117
  %v157 = vunpack.c.l.b16 %v118
  %v158 = vunpack.c.l.b16 %v119
  %v159 = vunpack.c.l.b16 %v120
  %v160 = vunpack.c.l.b16 %v121
  %v161 = vunpack.c.l.b16 %v122
  %v162 = vunpack.c.l.b16 %v123
  %v163 = vunpack.c.l.b16 %v124
  %v164 = vunpack.c.l.b16 %v125
  %v165 = vunpack.c.l.b16 %v126
  %v166 = vunpack.c.l.b16 %v127
  %v167 = vunpack.c.l.b16 %v128
  %v168 = vunpack.c.l.b16 %v129
  %v169 = vunpack.c.l.b16 %v130
  %v170 = vunpack.c.l.b16 %v131
  %v171 = vpack.c.b16 %v156, %v155
  %v172 = vpack.c.b16 %v158, %v157
  %v173 = vpack.c.b16 %v160, %v159
  %v174 = vpack.c.b16 %v162, %v161
  %v175 = vpack.c.b16 %v164, %v163
  %v176 = vpack.c.b16 %v166, %v165
  %v177 = vpack.c.b16 %v168, %v167
  %v178 = vpack.c.b16 %v170, %v169
  %187 = vmatprep.subr.bf16.mxu0 0
  %188 = vmatpush1.bf16.msra.mxu0 %v171
  %189 = vmatprep.subr.bf16.mxu0 0
  %190 = vmatpush1.bf16.msra.mxu0 %v172
  %191 = vmatprep.subr.bf16.mxu0 0
  %192 = vmatpush1.bf16.msra.mxu0 %v173
  %193 = vmatprep.subr.bf16.mxu0 0
  %194 = vmatpush1.bf16.msra.mxu0 %v174
  %195 = vmatprep.subr.bf16.mxu0 0
  %196 = vmatpush1.bf16.msra.mxu0 %v175
  %197 = vmatprep.subr.bf16.mxu0 0
  %198 = vmatpush1.bf16.msra.mxu0 %v176
  %199 = vmatprep.subr.bf16.mxu0 0
  %200 = vmatpush1.bf16.msra.mxu0 %v177
  %201 = vmatprep.subr.bf16.mxu0 0
  %202 = vmatpush1.bf16.msra.mxu0 %v178
  %203 = vmatprep.subr.bf16.mxu0 0
  %204 = vmatpush1.bf16.msra.mxu0 0
  %205 = vmatprep.subr.bf16.mxu0 0
  %206 = vmatpush1.bf16.msra.mxu0 0
  %207 = vmatprep.subr.bf16.mxu0 0
  %208 = vmatpush1.bf16.msra.mxu0 0
  %209 = vmatprep.subr.bf16.mxu0 0
  %210 = vmatpush1.bf16.msra.mxu0 0
  %211 = vmatprep.subr.bf16.mxu0 0
  %212 = vmatpush1.bf16.msra.mxu0 0
  %213 = vmatprep.subr.bf16.mxu0 0
  %214 = vmatpush1.bf16.msra.mxu0 0
  %215 = vmatprep.subr.bf16.mxu0 0
  %216 = vmatpush1.bf16.msra.mxu0 0
  %217 = vmatprep.subr.bf16.mxu0 0
  %218 = vmatpush1.bf16.msra.mxu0 0
  %219 = vmatprep.mubr.bf16.mxu0 0
  %220 = vmatmul.mubr.bf16.gmra.mrb[0].mxu0 %v115
  %v221 = vpop.f32.mrb[0].mxu0
  %v222 = vadd.f32 %v137, %v221
  %v223 = vpop.f32.mrb[0].mxu0
  %v224 = vpop.f32.mrb[0].mxu0
  %v225 = vpop.f32.mrb[0].mxu0
  %226 = vdwg.mxu0
  %v227 = vmax.f32 %v222, 0.0
  %v228 = vpack.c.bf16 %v227, %v227
  %v229 = vld [vmem:[%s5] sm:$0xf]
  %v230 = vld [vmem:[%s5 + $0x4] sm:$0xf]
  %v231 = vld [vmem:[%s5 + $0x8] sm:$0xf]
  %v232 = vld [vmem:[%s5 + $0xc] sm:$0xf]
  %v233 = vld [vmem:[%s5 + $0x10] sm:$0xf]
  %v234 = vld [vmem:[%s5 + $0x14] sm:$0xf]
  %v235 = vld [vmem:[%s5 + $0x18] sm:$0xf]
  %v236 = vld [vmem:[%s5 + $0x1c] sm:$0xf]
  %v237 = vld [vmem:[%s5 + $0x20] sm:$0xf]
  %v238 = vld [vmem:[%s5 + $0x24] sm:$0xf]
  %v239 = vld [vmem:[%s5 + $0x28] sm:$0xf]
  %v240 = vld [vmem:[%s5 + $0x2c] sm:$0xf]
  %v241 = vld [vmem:[%s5 + $0x30] sm:$0xf]
  %v242 = vld [vmem:[%s5 + $0x34] sm:$0xf]
  %v243 = vld [vmem:[%s5 + $0x38] sm:$0xf]
  %v244 = vld [vmem:[%s5 + $0x3c] sm:$0xf]
  %v245 = vld [vmem:[%s6] sm:$0x1]
  %v247 = vlaneseq
  %v248 = vshrl.u32 %v247, 7
  %v249 = vsub.s32 0, %v248
  %v250 = vrot.slane %v245, %v249
  %v268 = vunpack.c.l.b16 %v229
  %v269 = vunpack.c.l.b16 %v230
  %v270 = vunpack.c.l.b16 %v231
  %v271 = vunpack.c.l.b16 %v232
  %v272 = vunpack.c.l.b16 %v233
  %v273 = vunpack.c.l.b16 %v234
  %v274 = vunpack.c.l.b16 %v235
  %v275 = vunpack.c.l.b16 %v236
  %v276 = vunpack.c.l.b16 %v237
  %v277 = vunpack.c.l.b16 %v238
  %v278 = vunpack.c.l.b16 %v239
  %v279 = vunpack.c.l.b16 %v240
  %v280 = vunpack.c.l.b16 %v241
  %v281 = vunpack.c.l.b16 %v242
  %v282 = vunpack.c.l.b16 %v243
  %v283 = vunpack.c.l.b16 %v244
  %v284 = vpack.c.b16 %v269, %v268
  %v285 = vpack.c.b16 %v271, %v270
  %v286 = vpack.c.b16 %v273, %v272
  %v287 = vpack.c.b16 %v275, %v274
  %v288 = vpack.c.b16 %v277, %v276
  %v289 = vpack.c.b16 %v279, %v278
  %v290 = vpack.c.b16 %v281, %v280
  %v291 = vpack.c.b16 %v283, %v282
  %300 = vmatprep.subr.bf16.mxu0 0
  %301 = vmatpush1.bf16.msra.mxu0 %v284
  %302 = vmatprep.subr.bf16.mxu0 0
  %303 = vmatpush1.bf16.msra.mxu0 %v285
  %304 = vmatprep.subr.bf16.mxu0 0
  %305 = vmatpush1.bf16.msra.mxu0 %v286
  %306 = vmatprep.subr.bf16.mxu0 0
  %307 = vmatpush1.bf16.msra.mxu0 %v287
  %308 = vmatprep.subr.bf16.mxu0 0
  %309 = vmatpush1.bf16.msra.mxu0 %v288
  %310 = vmatprep.subr.bf16.mxu0 0
  %311 = vmatpush1.bf16.msra.mxu0 %v289
  %312 = vmatprep.subr.bf16.mxu0 0
  %313 = vmatpush1.bf16.msra.mxu0 %v290
  %314 = vmatprep.subr.bf16.mxu0 0
  %315 = vmatpush1.bf16.msra.mxu0 %v291
  %316 = vmatprep.subr.bf16.mxu0 0
  %317 = vmatpush1.bf16.msra.mxu0 0
  %318 = vmatprep.subr.bf16.mxu0 0
  %319 = vmatpush1.bf16.msra.mxu0 0
  %320 = vmatprep.subr.bf16.mxu0 0
  %321 = vmatpush1.bf16.msra.mxu0 0
  %322 = vmatprep.subr.bf16.mxu0 0
  %323 = vmatpush1.bf16.msra.mxu0 0
  %324 = vmatprep.subr.bf16.mxu0 0
  %325 = vmatpush1.bf16.msra.mxu0 0
  %326 = vmatprep.subr.bf16.mxu0 0
  %327 = vmatpush1.bf16.msra.mxu0 0
  %328 = vmatprep.subr.bf16.mxu0 0
  %329 = vmatpush1.bf16.msra.mxu0 0
  %330 = vmatprep.subr.bf16.mxu0 0
  %331 = vmatpush1.bf16.msra.mxu0 0
  %332 = vmatprep.mubr.bf16.mxu0 0
  %333 = vmatmul.mubr.bf16.gmra.mrb[0].mxu0 %v228
  %v334 = vpop.f32.mrb[0].mxu0
  %v335 = vadd.f32 %v250, %v334
  %v336 = vpop.f32.mrb[0].mxu0
  %v337 = vpop.f32.mrb[0].mxu0
  %v338 = vpop.f32.mrb[0].mxu0
  %339 = vdwg.mxu0
  %vm340 = vcmask 15360
  %341 = vst.msk [vmem:[%s7] sm:$0xff] %vm340, %v335
  // Predicated region
  $region30: #{qnetwork_forward.1} parent=0 // pred_check
    _
  $region31: #{qnetwork_forward.1} parent=0 // pred_check_branch
    %343 = sbr.rel (0) target = $region33
  $region32: #{qnetwork_forward.1} parent=0 // pred_region
    _
  $region33: #{qnetwork_forward.1} parent=0 // pred_fallthru
    _
  // Predicated region
  $region34: #{qnetwork_forward.1} parent=0 // pred_check
    _
  $region35: #{qnetwork_forward.1} parent=0 // pred_check_branch
    %345 = sbr.rel (0) target = $region37
  $region36: #{qnetwork_forward.1} parent=0 // pred_region
    _
  $region37: #{qnetwork_forward.1} parent=0 // pred_fallthru
    _

</llo_original>
